<compile_context>
chip_gen: v7x
topology: tpu7x:2x2x1
jax: 0.10.0
libtpu: 0.0.40
codegen_flags: <defaults>
</compile_context>

<pallas_src>
import jax
import jax.numpy as jnp
from jax.experimental import pallas as pl
from jax.experimental.pallas import tpu as pltpu


def _round_up(x, m):
    return ((x + m - 1) // m) * m


def _cdiv(a, b):
    return (a + b - 1) // b


# ---------------------------------------------------------------------------
# Kernel: whole MLP forward for one batch tile.
#   layer_num-1 hidden (Linear + relu) layers, then the last Linear,
#   last_activation = None (matches the PyTorch module defaults).
# ---------------------------------------------------------------------------
def make_mlp_kernel(n_layers):
    def kernel(*refs):
        x_ref, o_ref = refs[0], refs[-1]
        p_refs = refs[1:-1]                      # (w0, b0, w1, b1, ..., wL, bL)
        h = x_ref[...]                           # f32 (tm, in_dim)
        for li in range(n_layers):               # static Python loop, traced once
            w_ref = p_refs[2 * li]
            b_ref = p_refs[2 * li + 1]
            # MXU matmul; operand cast follows the weight dtype (bf16 hidden, f32 last),
            # accumulation is always f32.
            h = jnp.dot(h.astype(w_ref.dtype), w_ref[...],
                        preferred_element_type=jnp.float32)
            h = h + b_ref[...]                   # bias stays f32
            if li < n_layers - 1:
                h = jnp.maximum(h, 0.0)          # activation_function = relu
            # last layer: no last_activation
        o_ref[...] = h.astype(o_ref.dtype)       # narrow (tm, out_dim) store
    return kernel


# ---------------------------------------------------------------------------
# Pure-XLA forward (reference + small-batch fallback)
# ---------------------------------------------------------------------------
def reference_forward(x, params):
    h = x
    for w_t, b in params[:-1]:
        h = jnp.maximum(h @ w_t + b[None, :], 0.0)
    w_t, b = params[-1]
    return h @ w_t + b[None, :]


# ---------------------------------------------------------------------------
# Wrapper
# ---------------------------------------------------------------------------
def mlp_forward(x, params, *, block_batch=4096, use_bf16=True, min_pallas_batch=512):
    """Forward pass of `Network`.

    x:      (B, input_dim) float32
    params: list of (W_t, b) per Linear layer, W_t (in, out), b (out,), float32
    """
    B, in_dim = x.shape
    n_layers = len(params)
    out_dim = params[-1][0].shape[1]

    # Small-batch escape hatch: launch + DMA latency dominates, let XLA fuse it.
    if B < min_pallas_batch:
        return reference_forward(x, params)

    # Batch tile: multiple of 8 sublanes, capped at block_batch, and chosen so the
    # grid has at least two roughly balanced steps (v7x 2-TC sharding).
    tm = min(block_batch, _round_up(_cdiv(B, 2), 8))
    tm = max(tm, 8)
    grid = _cdiv(B, tm)                          # ragged last block handled by Pallas

    hidden_dtype = jnp.bfloat16 if use_bf16 else jnp.float32

    flat_inputs = [x.astype(jnp.float32)]        # no pad, no wrapper-side bf16 pass
    in_specs = [pl.BlockSpec((tm, in_dim), lambda i: (i, 0))]

    param_bytes = 0
    flops = 0
    for li, (w_t, b) in enumerate(params):
        d_in, d_out = w_t.shape
        # Hidden layers in bf16 (MXU), last layer kept f32 for accuracy.
        w_dtype = jnp.float32 if li == n_layers - 1 else hidden_dtype
        wk = w_t.astype(w_dtype)
        bk = b.astype(jnp.float32)[None, :]
        flat_inputs.append(wk)
        flat_inputs.append(bk)
        # Constant index_maps -> params resident in VMEM across all grid steps.
        in_specs.append(pl.BlockSpec((d_in, d_out), lambda i: (0, 0)))
        in_specs.append(pl.BlockSpec((1, d_out), lambda i: (0, 0)))
        param_bytes += d_in * d_out * jnp.dtype(w_dtype).itemsize + d_out * 4
        flops += 2 * B * d_in * d_out

    cost = pl.CostEstimate(
        flops=flops,
        transcendentals=0,
        bytes_accessed=B * in_dim * 4 + B * out_dim * 4 + param_bytes,
    )

    out = pl.pallas_call(
        make_mlp_kernel(n_layers),
        out_shape=jax.ShapeDtypeStruct((B, out_dim), jnp.float32),
        grid=(grid,),
        in_specs=in_specs,
        # Narrow output block: last dim equals the full array dim -> legal, and the
        # HBM writeback is out_dim*4 bytes/row instead of 512 bytes/row.
        out_specs=pl.BlockSpec((tm, out_dim), lambda i: (i, 0)),
        compiler_params=pltpu.CompilerParams(
            dimension_semantics=("parallel",),   # shard batch across TCs on v7x
        ),
        cost_estimate=cost,
    )(*flat_inputs)

    return out


# ---------------------------------------------------------------------------
# Deterministic parameter init (matches nn.init.orthogonal_ + zero bias)
# ---------------------------------------------------------------------------
def orthogonal_weight(key, out_dim, in_dim):
    """Orthogonal matrix of shape (out_dim, in_dim) (PyTorch Linear layout)."""
    rows, cols = out_dim, in_dim
    a = jax.random.normal(key, (max(rows, cols), min(rows, cols)), dtype=jnp.float32)
    q, r = jnp.linalg.qr(a)
    q = q * jnp.sign(jnp.diagonal(r))
    if rows < cols:
        q = q.T
    return q[:rows, :cols]


def build_params(key, layer_num, input_dim, output_dim, hidden_dim):
    layers_unit = [input_dim] + [hidden_dim] * (layer_num - 1)
    dims = list(zip(layers_unit[:-1], layers_unit[1:])) + [(layers_unit[-1], output_dim)]
    params = []
    for i, (d_in, d_out) in enumerate(dims):
        k = jax.random.fold_in(key, i)
        w = orthogonal_weight(k, d_out, d_in)     # (out, in) as in PyTorch
        b = jnp.zeros((d_out,), dtype=jnp.float32)
        params.append((w.T, b))                   # pre-transpose to (in, out)
    return params


if __name__ == "__main__":
    # Network(layer_num=3, input_dim=16, output_dim=4, hidden_dim=32,
    #         activation_function=torch.relu, last_activation=None)
    layer_num, input_dim, output_dim, hidden_dim = 3, 16, 4, 32

    key = jax.random.PRNGKey(0)
    k_x, k_p = jax.random.split(key)
    params = build_params(k_p, layer_num, input_dim, output_dim, hidden_dim)

    # Case 1: tiny batch forced through the Pallas path, all-f32 -> exact match.
    x_small = jax.random.normal(k_x, (8, input_dim), dtype=jnp.float32)
    out_small = jax.block_until_ready(
        mlp_forward(x_small, params, use_bf16=False, min_pallas_batch=0))
    ref_small = reference_forward(x_small, params)
    assert out_small.shape == (8, output_dim)
    assert jnp.allclose(out_small, ref_small, atol=1e-5, rtol=1e-5), \
        "Pallas f32 output mismatch vs reference"

    # Case 2: RL-style ragged batch (tm=520, grid=2, masked edge block) on the
    # bf16-hidden / f32-last-layer path.
    x_big = jax.random.normal(jax.random.fold_in(k_x, 1), (1037, input_dim),
                              dtype=jnp.float32)
    out_big = jax.block_until_ready(
        mlp_forward(x_big, params, use_bf16=True))
    ref_big = reference_forward(x_big, params)
    assert out_big.shape == (1037, output_dim)
    assert jnp.allclose(out_big, ref_big, atol=1e-1, rtol=1e-1), \
        "Pallas bf16 output mismatch vs reference"

    # Case 3: small-batch escape hatch (plain XLA fallback path).
    out_fb = jax.block_until_ready(mlp_forward(x_small, params))
    assert jnp.allclose(out_fb, ref_small, atol=1e-5, rtol=1e-5), \
        "XLA fallback mismatch vs reference"

    print("KERNEL_OK")
</pallas_src>

<mosaic_0001>
module attributes {stable_mosaic.version = 11 : i64} {
  func.func @kernel(%arg0: i32, %arg1: memref<8x16xf32, #tpu.memory_space<vmem>>, %arg2: memref<16x32xf32, #tpu.memory_space<vmem>>, %arg3: memref<1x32xf32, #tpu.memory_space<vmem>>, %arg4: memref<32x32xf32, #tpu.memory_space<vmem>>, %arg5: memref<1x32xf32, #tpu.memory_space<vmem>>, %arg6: memref<32x4xf32, #tpu.memory_space<vmem>>, %arg7: memref<1x4xf32, #tpu.memory_space<vmem>>, %arg8: memref<8x4xf32, #tpu.memory_space<vmem>>) attributes {dimension_semantics = [#tpu.dimension_semantics<parallel>], iteration_bounds = array<i64: 1>, scalar_prefetch = 0 : i64, scratch_operands = 0 : i64, tpu.core_type = #tpu.core_type<tc>, window_params = [{transform_indices = @transform_0, window_bounds = array<i64: 8, 16>}, {pipeline_mode = #tpu.pipeline_mode<synchronous>, transform_indices = @transform_1, window_bounds = array<i64: 16, 32>}, {pipeline_mode = #tpu.pipeline_mode<synchronous>, transform_indices = @transform_2, window_bounds = array<i64: 1, 32>}, {pipeline_mode = #tpu.pipeline_mode<synchronous>, transform_indices = @transform_3, window_bounds = array<i64: 32, 32>}, {pipeline_mode = #tpu.pipeline_mode<synchronous>, transform_indices = @transform_4, window_bounds = array<i64: 1, 32>}, {pipeline_mode = #tpu.pipeline_mode<synchronous>, transform_indices = @transform_5, window_bounds = array<i64: 32, 4>}, {pipeline_mode = #tpu.pipeline_mode<synchronous>, transform_indices = @transform_6, window_bounds = array<i64: 1, 4>}, {transform_indices = @transform_7, window_bounds = array<i64: 8, 4>}]} {
    %c0 = arith.constant 0 : index
    %c0_0 = arith.constant 0 : index
    %0 = vector.load %arg1[%c0, %c0_0] : memref<8x16xf32, #tpu.memory_space<vmem>>, vector<8x16xf32>
    %c0_1 = arith.constant 0 : index
    %c0_2 = arith.constant 0 : index
    %1 = vector.load %arg2[%c0_1, %c0_2] : memref<16x32xf32, #tpu.memory_space<vmem>>, vector<16x32xf32>
    %cst = arith.constant dense<0.000000e+00> : vector<8x32xf32>
    %2 = tpu.matmul %0, %1, %cst {dimension_numbers = #tpu.dot_dimension_numbers<[1], [0], [0], [1], [0, 0, 1, 1], [], []>} : vector<8x16xf32>, vector<16x32xf32>, vector<8x32xf32> -> vector<8x32xf32>
    %c0_3 = arith.constant 0 : index
    %c0_4 = arith.constant 0 : index
    %3 = vector.load %arg3[%c0_3, %c0_4] : memref<1x32xf32, #tpu.memory_space<vmem>>, vector<1x32xf32>
    %4 = vector.broadcast %3 : vector<1x32xf32> to vector<8x32xf32>
    %5 = arith.addf %2, %4 : vector<8x32xf32>
    %cst_5 = arith.constant 0.000000e+00 : f32
    %6 = vector.broadcast %cst_5 : f32 to vector<8x32xf32>
    %7 = arith.maximumf %5, %6 : vector<8x32xf32>
    %c0_6 = arith.constant 0 : index
    %c0_7 = arith.constant 0 : index
    %8 = vector.load %arg4[%c0_6, %c0_7] : memref<32x32xf32, #tpu.memory_space<vmem>>, vector<32x32xf32>
    %cst_8 = arith.constant dense<0.000000e+00> : vector<8x32xf32>
    %9 = tpu.matmul %7, %8, %cst_8 {dimension_numbers = #tpu.dot_dimension_numbers<[1], [0], [0], [1], [0, 0, 1, 1], [], []>} : vector<8x32xf32>, vector<32x32xf32>, vector<8x32xf32> -> vector<8x32xf32>
    %c0_9 = arith.constant 0 : index
    %c0_10 = arith.constant 0 : index
    %10 = vector.load %arg5[%c0_9, %c0_10] : memref<1x32xf32, #tpu.memory_space<vmem>>, vector<1x32xf32>
    %11 = vector.broadcast %10 : vector<1x32xf32> to vector<8x32xf32>
    %12 = arith.addf %9, %11 : vector<8x32xf32>
    %cst_11 = arith.constant 0.000000e+00 : f32
    %13 = vector.broadcast %cst_11 : f32 to vector<8x32xf32>
    %14 = arith.maximumf %12, %13 : vector<8x32xf32>
    %c0_12 = arith.constant 0 : index
    %c0_13 = arith.constant 0 : index
    %15 = vector.load %arg6[%c0_12, %c0_13] : memref<32x4xf32, #tpu.memory_space<vmem>>, vector<32x4xf32>
    %cst_14 = arith.constant dense<0.000000e+00> : vector<8x4xf32>
    %16 = tpu.matmul %14, %15, %cst_14 {dimension_numbers = #tpu.dot_dimension_numbers<[1], [0], [0], [1], [0, 0, 1, 1], [], []>} : vector<8x32xf32>, vector<32x4xf32>, vector<8x4xf32> -> vector<8x4xf32>
    %c0_15 = arith.constant 0 : index
    %c0_16 = arith.constant 0 : index
    %17 = vector.load %arg7[%c0_15, %c0_16] : memref<1x4xf32, #tpu.memory_space<vmem>>, vector<1x4xf32>
    %18 = vector.broadcast %17 : vector<1x4xf32> to vector<8x4xf32>
    %19 = arith.addf %16, %18 : vector<8x4xf32>
    %c0_17 = arith.constant 0 : index
    %c0_18 = arith.constant 0 : index
    %20 = vector.load %arg8[%c0_17, %c0_18] : memref<8x4xf32, #tpu.memory_space<vmem>>, vector<8x4xf32>
    tpu.vector_store %arg8[%c0_17, %c0_18], %19 {strides = array<i32>} : memref<8x4xf32, #tpu.memory_space<vmem>>, vector<8x4xf32>,
    return
  }
  func.func @transform_0(%arg0: i32) -> (i32, i32) {
    %c0_i32 = arith.constant 0 : i32
    %c0_i32_0 = arith.constant 0 : i32
    return %arg0, %c0_i32 : i32, i32
  }
  func.func @transform_1(%arg0: i32) -> (i32, i32) {
    %c0_i32 = arith.constant 0 : i32
    %c0_i32_0 = arith.constant 0 : i32
    %c0_i32_1 = arith.constant 0 : i32
    return %c0_i32, %c0_i32_0 : i32, i32
  }
  func.func @transform_2(%arg0: i32) -> (i32, i32) {
    %c0_i32 = arith.constant 0 : i32
    %c0_i32_0 = arith.constant 0 : i32
    %c0_i32_1 = arith.constant 0 : i32
    return %c0_i32, %c0_i32_0 : i32, i32
  }
  func.func @transform_3(%arg0: i32) -> (i32, i32) {
    %c0_i32 = arith.constant 0 : i32
    %c0_i32_0 = arith.constant 0 : i32
    %c0_i32_1 = arith.constant 0 : i32
    return %c0_i32, %c0_i32_0 : i32, i32
  }
  func.func @transform_4(%arg0: i32) -> (i32, i32) {
    %c0_i32 = arith.constant 0 : i32
    %c0_i32_0 = arith.constant 0 : i32
    %c0_i32_1 = arith.constant 0 : i32
    return %c0_i32, %c0_i32_0 : i32, i32
  }
  func.func @transform_5(%arg0: i32) -> (i32, i32) {
    %c0_i32 = arith.constant 0 : i32
    %c0_i32_0 = arith.constant 0 : i32
    %c0_i32_1 = arith.constant 0 : i32
    return %c0_i32, %c0_i32_0 : i32, i32
  }
  func.func @transform_6(%arg0: i32) -> (i32, i32) {
    %c0_i32 = arith.constant 0 : i32
    %c0_i32_0 = arith.constant 0 : i32
    %c0_i32_1 = arith.constant 0 : i32
    return %c0_i32, %c0_i32_0 : i32, i32
  }
  func.func @transform_7(%arg0: i32) -> (i32, i32) {
    %c0_i32 = arith.constant 0 : i32
    %c0_i32_0 = arith.constant 0 : i32
    return %arg0, %c0_i32 : i32, i32
  }
}

</mosaic_0001>

<llo_original>
// kernel: tpu_custom_call.1
$region0: #{tpu_custom_call.1}
  #allocation0 [shape = 'u32[]', space=smem, size = 0x4, offset = 0x4, fixed_abs, tag = 'smem constant byte address 0x4 - core index']
  #allocation1 [shape = 'u32[144,128]{1,0:T(1,128)}', space=vmem, size = 0x12000, scoped, tag = 'internal scratch']
  %s0 = inlined_call_operand.vmem [shape: f32[8,16], index: 0, kind: input, shape index: {}]
  %s1 = inlined_call_operand.hbm [shape: f32[16,32], index: 1, kind: input, shape index: {}]
  %s2 = inlined_call_operand.vmem [shape: f32[1,32], index: 2, kind: input, shape index: {}]
  %s3 = inlined_call_operand.vmem [shape: f32[32,32], index: 3, kind: input, shape index: {}]
  %s4 = inlined_call_operand.vmem [shape: f32[1,32], index: 4, kind: input, shape index: {}]
  %s5 = inlined_call_operand.vmem [shape: f32[32,4], index: 5, kind: input, shape index: {}]
  %s6 = inlined_call_operand.vmem [shape: f32[1,4], index: 6, kind: input, shape index: {}]
  %s7 = inlined_call_operand.vmem [shape: f32[8,4], index: 7, kind: output, shape index: {}]
  %s8 = sld [smem:[#allocation0]]
  $region42: #{tpu_custom_call.1} parent=0
    _
  %s10 = ssub.s32 1, %s8
  %s11 = scalar_select 0, %s10, %s8
  $region1: #{tpu_custom_call.1} parent=0
    #allocation2 [shape = 'u8[8192]{0}', space=vmem, size = 0x2000, scoped, tag = 'input window, operand 1, single buffered']
    #allocation3 [shape = 's32[1]{0}', space=sflag, size = 0x4, scoped, tag = 'scoped memory for tpu_custom_call.1']
    %12 = vsyncpa [#allocation3], 0
    // Predicated region
    $region2: #{tpu_custom_call.1} parent=1 // pred_check
      _
    $region3: #{tpu_custom_call.1} parent=1 // pred_check_branch
      %14 = sbr.rel (0) target = $region5
    $region4: #{tpu_custom_call.1} parent=1 // pred_region
      _
    $region5: #{tpu_custom_call.1} parent=1 // pred_fallthru
      _
    // Predicated region
    $region6: #{tpu_custom_call.1} parent=1 // pred_check
      _
    $region7: #{tpu_custom_call.1} parent=1 // pred_check_branch
      %16 = sbr.rel (0) target = $region9
    $region8: #{tpu_custom_call.1} parent=1 // pred_region
      %s18 = ssub.s32 256, 256
      %19 = vsyncadd [#allocation3], %s18
      %s20 = sshll.u32 [#allocation2], 4
      %s21 = int_to_ptr.vmem [resolvable:$true] %s20
      %26 = dma.hbm_to_vmem [thread:$0]  %s1, 256, %s21, [#allocation3], 128, 128, 8
    $region9: #{tpu_custom_call.1} parent=1 // pred_fallthru
      _
    // Predicated region
    $region10: #{tpu_custom_call.1} parent=1 // pred_check
      _
    $region11: #{tpu_custom_call.1} parent=1 // pred_check_branch
      %28 = sbr.rel (0) target = $region13
    $region12: #{tpu_custom_call.1} parent=1 // pred_region
      _
    $region13: #{tpu_custom_call.1} parent=1 // pred_fallthru
      _
    // Predicated region
    $region14: #{tpu_custom_call.1} parent=1 // pred_check
      _
    $region15: #{tpu_custom_call.1} parent=1 // pred_check_branch
      %30 = sbr.rel (0) target = $region17
    $region16: #{tpu_custom_call.1} parent=1 // pred_region
      _
    $region17: #{tpu_custom_call.1} parent=1 // pred_fallthru
      _
    // Predicated region
    $region18: #{tpu_custom_call.1} parent=1 // pred_check
      _
    $region19: #{tpu_custom_call.1} parent=1 // pred_check_branch
      %32 = sbr.rel (0) target = $region21
    $region20: #{tpu_custom_call.1} parent=1 // pred_region
      _
    $region21: #{tpu_custom_call.1} parent=1 // pred_fallthru
      _
    // Predicated region
    $region22: #{tpu_custom_call.1} parent=1 // pred_check
      _
    $region23: #{tpu_custom_call.1} parent=1 // pred_check_branch
      %34 = sbr.rel (0) target = $region25
    $region24: #{tpu_custom_call.1} parent=1 // pred_region
      _
    $region25: #{tpu_custom_call.1} parent=1 // pred_fallthru
      _
    // Predicated region
    $region26: #{tpu_custom_call.1} parent=1 // pred_check
      _
    $region27: #{tpu_custom_call.1} parent=1 // pred_check_branch
      %36 = sbr.rel (0) target = $region29
    $region28: #{tpu_custom_call.1} parent=1 // pred_region
      _
    $region29: #{tpu_custom_call.1} parent=1 // pred_fallthru
      _
    // Predicated region
    $region30: #{tpu_custom_call.1} parent=1 // pred_check
      _
    $region31: #{tpu_custom_call.1} parent=1 // pred_check_branch
      %38 = sbr.rel (0) target = $region33
    $region32: #{tpu_custom_call.1} parent=1 // pred_region
      %39 = dma.done [#allocation3], 256
    $region33: #{tpu_custom_call.1} parent=1 // pred_fallthru
      _
    %v40 = vld [vmem:[%s0] sm:$0xff]
    %v41 = vld [vmem:[#allocation2] sm:$0xff]
    %v42 = vld [vmem:[#allocation2 + $0x8] sm:$0xff]
    %v43 = vld [vmem:[%s2] sm:$0x1]
    %v45 = vlaneseq
    %v46 = vshrl.u32 %v45, 7
    %v47 = vsub.s32 0, %v46
    %v48 = vrot.slane %v43, %v47
    %vm50 = vcmask 130048
    %v52 = vsel %vm50, %v40, 0
    %54 = vmatprep.subr.mxu0 0.0
    %55 = vmatpush1.msra.mxu0 %v41
    %56 = vmatprep.subr.mxu0 0.0
    %57 = vmatpush1.msra.mxu0 %v42
    %58 = vmatprep.subr.mxu0 0.0
    %59 = vmatpush1.msra.mxu0 0.0
    %60 = vmatprep.subr.mxu0 0.0
    %61 = vmatpush1.msra.mxu0 0.0
    %62 = vmatprep.subr.mxu0 0.0
    %63 = vmatpush1.msra.mxu0 0.0
    %64 = vmatprep.subr.mxu0 0.0
    %65 = vmatpush1.msra.mxu0 0.0
    %66 = vmatprep.subr.mxu0 0.0
    %67 = vmatpush1.msra.mxu0 0.0
    %68 = vmatprep.subr.mxu0 0.0
    %69 = vmatpush1.msra.mxu0 0.0
    %70 = vmatprep.subr.mxu0 0.0
    %71 = vmatpush1.msra.mxu0 0.0
    %72 = vmatprep.subr.mxu0 0.0
    %73 = vmatpush1.msra.mxu0 0.0
    %74 = vmatprep.subr.mxu0 0.0
    %75 = vmatpush1.msra.mxu0 0.0
    %76 = vmatprep.subr.mxu0 0.0
    %77 = vmatpush1.msra.mxu0 0.0
    %78 = vmatprep.subr.mxu0 0.0
    %79 = vmatpush1.msra.mxu0 0.0
    %80 = vmatprep.subr.mxu0 0.0
    %81 = vmatpush1.msra.mxu0 0.0
    %82 = vmatprep.subr.mxu0 0.0
    %83 = vmatpush1.msra.mxu0 0.0
    %84 = vmatprep.subr.mxu0 0.0
    %85 = vmatpush1.msra.mxu0 0.0
    %86 = vmatprep.subr.mxu0 0.0
    %87 = vmatpush1.msra.mxu0 0.0
    %88 = vmatprep.subr.mxu0 0.0
    %89 = vmatpush1.msra.mxu0 0.0
    %90 = vmatprep.subr.mxu0 0.0
    %91 = vmatpush1.msra.mxu0 0.0
    %92 = vmatprep.subr.mxu0 0.0
    %93 = vmatpush1.msra.mxu0 0.0
    %94 = vmatprep.subr.mxu0 0.0
    %95 = vmatpush1.msra.mxu0 0.0
    %96 = vmatprep.subr.mxu0 0.0
    %97 = vmatpush1.msra.mxu0 0.0
    %98 = vmatprep.subr.mxu0 0.0
    %99 = vmatpush1.msra.mxu0 0.0
    %100 = vmatprep.subr.mxu0 0.0
    %101 = vmatpush1.msra.mxu0 0.0
    %102 = vmatprep.subr.mxu0 0.0
    %103 = vmatpush1.msra.mxu0 0.0
    %104 = vmatprep.subr.mxu0 0.0
    %105 = vmatpush1.msra.mxu0 0.0
    %106 = vmatprep.subr.mxu0 0.0
    %107 = vmatpush1.msra.mxu0 0.0
    %108 = vmatprep.subr.mxu0 0.0
    %109 = vmatpush1.msra.mxu0 0.0
    %110 = vmatprep.subr.mxu0 0.0
    %111 = vmatpush1.msra.mxu0 0.0
    %112 = vmatprep.subr.mxu0 0.0
    %113 = vmatpush1.msra.mxu0 0.0
    %114 = vmatprep.subr.mxu0 0.0
    %115 = vmatpush1.msra.mxu0 0.0
    %116 = vmatprep.subr.mxu0 0.0
    %117 = vmatpush1.msra.mxu0 0.0
    %118 = vmatprep.mubr.f32.mxu0 0.0
    %119 = vmatmul.mubr.f32.gmra.mrb[0].mxu0 %v52
    %v120 = vpop.f32.mrb[0].mxu0
    %v121 = vadd.f32 %v48, %v120
    %v122 = vpop.f32.mrb[0].mxu0
    %123 = vdwg.mxu0
    %v124 = vmax.f32 %v121, 0.0
    %v125 = vld [vmem:[%s3] sm:$0xff]
    %v126 = vld [vmem:[%s3 + $0x8] sm:$0xff]
    %v127 = vld [vmem:[%s3 + $0x10] sm:$0xff]
    %v128 = vld [vmem:[%s3 + $0x18] sm:$0xff]
    %v129 = vld [vmem:[%s4] sm:$0x1]
    %v131 = vlaneseq
    %v132 = vshrl.u32 %v131, 7
    %v133 = vsub.s32 0, %v132
    %v134 = vrot.slane %v129, %v133
    %vm136 = vcmask 261120
    %v138 = vsel %vm136, %v124, 0
    %140 = vmatprep.subr.mxu0 0.0
    %141 = vmatpush1.msra.mxu0 %v125
    %142 = vmatprep.subr.mxu0 0.0
    %143 = vmatpush1.msra.mxu0 %v126
    %144 = vmatprep.subr.mxu0 0.0
    %145 = vmatpush1.msra.mxu0 %v127
    %146 = vmatprep.subr.mxu0 0.0
    %147 = vmatpush1.msra.mxu0 %v128
    %148 = vmatprep.subr.mxu0 0.0
    %149 = vmatpush1.msra.mxu0 0.0
    %150 = vmatprep.subr.mxu0 0.0
    %151 = vmatpush1.msra.mxu0 0.0
    %152 = vmatprep.subr.mxu0 0.0
    %153 = vmatpush1.msra.mxu0 0.0
    %154 = vmatprep.subr.mxu0 0.0
    %155 = vmatpush1.msra.mxu0 0.0
    %156 = vmatprep.subr.mxu0 0.0
    %157 = vmatpush1.msra.mxu0 0.0
    %158 = vmatprep.subr.mxu0 0.0
    %159 = vmatpush1.msra.mxu0 0.0
    %160 = vmatprep.subr.mxu0 0.0
    %161 = vmatpush1.msra.mxu0 0.0
    %162 = vmatprep.subr.mxu0 0.0
    %163 = vmatpush1.msra.mxu0 0.0
    %164 = vmatprep.subr.mxu0 0.0
    %165 = vmatpush1.msra.mxu0 0.0
    %166 = vmatprep.subr.mxu0 0.0
    %167 = vmatpush1.msra.mxu0 0.0
    %168 = vmatprep.subr.mxu0 0.0
    %169 = vmatpush1.msra.mxu0 0.0
    %170 = vmatprep.subr.mxu0 0.0
    %171 = vmatpush1.msra.mxu0 0.0
    %172 = vmatprep.subr.mxu0 0.0
    %173 = vmatpush1.msra.mxu0 0.0
    %174 = vmatprep.subr.mxu0 0.0
    %175 = vmatpush1.msra.mxu0 0.0
    %176 = vmatprep.subr.mxu0 0.0
    %177 = vmatpush1.msra.mxu0 0.0
    %178 = vmatprep.subr.mxu0 0.0
    %179 = vmatpush1.msra.mxu0 0.0
    %180 = vmatprep.subr.mxu0 0.0
    %181 = vmatpush1.msra.mxu0 0.0
    %182 = vmatprep.subr.mxu0 0.0
    %183 = vmatpush1.msra.mxu0 0.0
    %184 = vmatprep.subr.mxu0 0.0
    %185 = vmatpush1.msra.mxu0 0.0
    %186 = vmatprep.subr.mxu0 0.0
    %187 = vmatpush1.msra.mxu0 0.0
    %188 = vmatprep.subr.mxu0 0.0
    %189 = vmatpush1.msra.mxu0 0.0
    %190 = vmatprep.subr.mxu0 0.0
    %191 = vmatpush1.msra.mxu0 0.0
    %192 = vmatprep.subr.mxu0 0.0
    %193 = vmatpush1.msra.mxu0 0.0
    %194 = vmatprep.subr.mxu0 0.0
    %195 = vmatpush1.msra.mxu0 0.0
    %196 = vmatprep.subr.mxu0 0.0
    %197 = vmatpush1.msra.mxu0 0.0
    %198 = vmatprep.subr.mxu0 0.0
    %199 = vmatpush1.msra.mxu0 0.0
    %200 = vmatprep.subr.mxu0 0.0
    %201 = vmatpush1.msra.mxu0 0.0
    %202 = vmatprep.subr.mxu0 0.0
    %203 = vmatpush1.msra.mxu0 0.0
    %204 = vmatprep.mubr.f32.mxu0 0.0
    %205 = vmatmul.mubr.f32.gmra.mrb[0].mxu0 %v138
    %v206 = vpop.f32.mrb[0].mxu0
    %v207 = vadd.f32 %v134, %v206
    %v208 = vpop.f32.mrb[0].mxu0
    %209 = vdwg.mxu0
    %v210 = vmax.f32 %v207, 0.0
    %v211 = vld [vmem:[%s5] sm:$0xff]
    %v212 = vld [vmem:[%s5 + $0x8] sm:$0xff]
    %v213 = vld [vmem:[%s5 + $0x10] sm:$0xff]
    %v214 = vld [vmem:[%s5 + $0x18] sm:$0xff]
    %v215 = vld [vmem:[%s6] sm:$0x1]
    %v217 = vlaneseq
    %v218 = vshrl.u32 %v217, 7
    %v219 = vsub.s32 0, %v218
    %v220 = vrot.slane %v215, %v219
    %v223 = vsel %vm136, %v210, 0
    %225 = vmatprep.subr.mxu0 0.0
    %226 = vmatpush1.msra.mxu0 %v211
    %227 = vmatprep.subr.mxu0 0.0
    %228 = vmatpush1.msra.mxu0 %v212
    %229 = vmatprep.subr.mxu0 0.0
    %230 = vmatpush1.msra.mxu0 %v213
    %231 = vmatprep.subr.mxu0 0.0
    %232 = vmatpush1.msra.mxu0 %v214
    %233 = vmatprep.subr.mxu0 0.0
    %234 = vmatpush1.msra.mxu0 0.0
    %235 = vmatprep.subr.mxu0 0.0
    %236 = vmatpush1.msra.mxu0 0.0
    %237 = vmatprep.subr.mxu0 0.0
    %238 = vmatpush1.msra.mxu0 0.0
    %239 = vmatprep.subr.mxu0 0.0
    %240 = vmatpush1.msra.mxu0 0.0
    %241 = vmatprep.subr.mxu0 0.0
    %242 = vmatpush1.msra.mxu0 0.0
    %243 = vmatprep.subr.mxu0 0.0
    %244 = vmatpush1.msra.mxu0 0.0
    %245 = vmatprep.subr.mxu0 0.0
    %246 = vmatpush1.msra.mxu0 0.0
    %247 = vmatprep.subr.mxu0 0.0
    %248 = vmatpush1.msra.mxu0 0.0
    %249 = vmatprep.subr.mxu0 0.0
    %250 = vmatpush1.msra.mxu0 0.0
    %251 = vmatprep.subr.mxu0 0.0
    %252 = vmatpush1.msra.mxu0 0.0
    %253 = vmatprep.subr.mxu0 0.0
    %254 = vmatpush1.msra.mxu0 0.0
    %255 = vmatprep.subr.mxu0 0.0
    %256 = vmatpush1.msra.mxu0 0.0
    %257 = vmatprep.subr.mxu0 0.0
    %258 = vmatpush1.msra.mxu0 0.0
    %259 = vmatprep.subr.mxu0 0.0
    %260 = vmatpush1.msra.mxu0 0.0
    %261 = vmatprep.subr.mxu0 0.0
    %262 = vmatpush1.msra.mxu0 0.0
    %263 = vmatprep.subr.mxu0 0.0
    %264 = vmatpush1.msra.mxu0 0.0
    %265 = vmatprep.subr.mxu0 0.0
    %266 = vmatpush1.msra.mxu0 0.0
    %267 = vmatprep.subr.mxu0 0.0
    %268 = vmatpush1.msra.mxu0 0.0
    %269 = vmatprep.subr.mxu0 0.0
    %270 = vmatpush1.msra.mxu0 0.0
    %271 = vmatprep.subr.mxu0 0.0
    %272 = vmatpush1.msra.mxu0 0.0
    %273 = vmatprep.subr.mxu0 0.0
    %274 = vmatpush1.msra.mxu0 0.0
    %275 = vmatprep.subr.mxu0 0.0
    %276 = vmatpush1.msra.mxu0 0.0
    %277 = vmatprep.subr.mxu0 0.0
    %278 = vmatpush1.msra.mxu0 0.0
    %279 = vmatprep.subr.mxu0 0.0
    %280 = vmatpush1.msra.mxu0 0.0
    %281 = vmatprep.subr.mxu0 0.0
    %282 = vmatpush1.msra.mxu0 0.0
    %283 = vmatprep.subr.mxu0 0.0
    %284 = vmatpush1.msra.mxu0 0.0
    %285 = vmatprep.subr.mxu0 0.0
    %286 = vmatpush1.msra.mxu0 0.0
    %287 = vmatprep.subr.mxu0 0.0
    %288 = vmatpush1.msra.mxu0 0.0
    %289 = vmatprep.mubr.f32.mxu0 0.0
    %290 = vmatmul.mubr.f32.gmra.mrb[0].mxu0 %v223
    %v291 = vpop.f32.mrb[0].mxu0
    %v292 = vadd.f32 %v220, %v291
    %v293 = vpop.f32.mrb[0].mxu0
    %294 = vdwg.mxu0
    %vm295 = vcmask 31744
    %296 = vst.msk [vmem:[%s7] sm:$0xff] %vm295, %v292
    // Predicated region
    $region34: #{tpu_custom_call.1} parent=1 // pred_check
      _
    $region35: #{tpu_custom_call.1} parent=1 // pred_check_branch
      %298 = sbr.rel (0) target = $region37
    $region36: #{tpu_custom_call.1} parent=1 // pred_region
      _
    $region37: #{tpu_custom_call.1} parent=1 // pred_fallthru
      _
    // Predicated region
    $region38: #{tpu_custom_call.1} parent=1 // pred_check
      _
    $region39: #{tpu_custom_call.1} parent=1 // pred_check_branch
      %300 = sbr.rel (0) target = $region41
    $region40: #{tpu_custom_call.1} parent=1 // pred_region
      _
    $region41: #{tpu_custom_call.1} parent=1 // pred_fallthru
      _
    %301 = vsyncpa [#allocation3], 1

</llo_original>
